<compile_context>
chip_gen: v5e
topology: v5e:2x2
jax: 0.10.0
libtpu: 0.0.40
codegen_flags: <defaults>
</compile_context>

<pallas_src>
import functools

import numpy as np
import jax
import jax.numpy as jnp
from jax.experimental import pallas as pl
from jax.experimental.pallas import tpu as pltpu


_VMEM_LIMIT_BYTES = 40 * 1024 * 1024   # > 16/32 MiB scoped defaults, < 64 MiB v7x physical
_MAX_LANE_TILE = 4096                  # lanes per block when the spatial axis is tiled
_SINGLE_BLOCK_LANES = 4096             # spatial sizes up to this use one (full-dim) lane block
_TARGET_BLOCK_BYTES = 4 * 1024 * 1024  # ~4 MiB input blocks


def _round_up(x, m):
    return ((x + m - 1) // m) * m


def _choose_tiles(bc, s, itemsize):
    """Pick (tile_rows, tile_s) giving ~4 MiB lane-dense blocks over the true shape."""
    if s <= _SINGLE_BLOCK_LANES:
        tile_s = s                      # full-dim lane block (legal even if not %128)
    else:
        tile_s = _MAX_LANE_TILE         # %128 aligned; last block partial via cdiv

    if bc <= 8:
        tile_rows = bc                  # full-dim row block
    else:
        target_rows = max(8, _TARGET_BLOCK_BYTES // max(1, tile_s * itemsize))
        tile_rows = min((target_rows // 8) * 8, 512)
        # Keep >= 2 row blocks so both v7x TensorCores get work on the mean pass
        # (its only "parallel" axis is the row axis).
        half_cap = _round_up((bc + 1) // 2, 8)
        tile_rows = max(8, min(tile_rows, half_cap))
    return tile_rows, tile_s


# ---------------- Pallas kernels (hot path) ----------------

def _mean_kernel(x_ref, o_ref, *, true_s, inv_s, need_lane_mask):
    # AdaptiveAvgPool3d(1): per-row mean, accumulated over the spatial grid axis.
    si = pl.program_id(1)

    @pl.when(si == 0)
    def _():
        o_ref[...] = jnp.zeros_like(o_ref)

    x = x_ref[...].astype(jnp.float32)
    if need_lane_mask:
        # Final spatial block is partial: out-of-bounds lanes are undefined on
        # read and must be zeroed before the sum.
        tile_s = x_ref.shape[-1]
        col = si * tile_s + jax.lax.broadcasted_iota(jnp.int32, x.shape, dimension=1)
        x = jnp.where(col < true_s, x, 0.0)
    o_ref[...] += jnp.sum(x, axis=-1, keepdims=True)

    @pl.when(si == pl.num_programs(1) - 1)
    def _():
        o_ref[...] = o_ref[...] * inv_s


def _masked_scale_kernel(x_ref, m_ref, o_ref):
    # out = inputs * dropped_mask.  Mask is (tile_rows, 1) in the input dtype and
    # exactly {0, 1}, so the multiply is exact; broadcast over lanes.
    # Edge blocks: garbage lanes/rows are never written back (masked writeback).
    o_ref[...] = x_ref[...] * m_ref[...]


def _spatial_mean(x2d, tile_rows, tile_s):
    """x2d: (BC, S) -> (BC, 1) float32 per-row mean over S."""
    bc, s = x2d.shape
    grid = (pl.cdiv(bc, tile_rows), pl.cdiv(s, tile_s))
    kernel = functools.partial(
        _mean_kernel,
        true_s=s,
        inv_s=1.0 / float(s),
        need_lane_mask=(s % tile_s != 0),
    )
    return pl.pallas_call(
        kernel,
        out_shape=jax.ShapeDtypeStruct((bc, 1), jnp.float32),
        grid=grid,
        in_specs=[pl.BlockSpec((tile_rows, tile_s), lambda i, si: (i, si))],
        out_specs=pl.BlockSpec((tile_rows, 1), lambda i, si: (i, 0)),
        compiler_params=pltpu.CompilerParams(
            dimension_semantics=("parallel", "arbitrary"),
            vmem_limit_bytes=_VMEM_LIMIT_BYTES,
        ),
    )(x2d)


def _masked_scale(x2d, mask_col, tile_rows, tile_s):
    """x2d: (BC, S), mask_col: (BC, 1) in x2d.dtype -> x2d * mask_col (broadcast)."""
    bc, s = x2d.shape
    grid = (pl.cdiv(bc, tile_rows), pl.cdiv(s, tile_s))
    # TODO(synk): with the mask prefetched to SMEM (PrefetchScalarGridSpec), fully
    # dropped row-tiles could skip their HBM reads entirely; kept the dense version.
    return pl.pallas_call(
        _masked_scale_kernel,
        out_shape=jax.ShapeDtypeStruct((bc, s), x2d.dtype),
        grid=grid,
        in_specs=[
            pl.BlockSpec((tile_rows, tile_s), lambda i, si: (i, si)),
            pl.BlockSpec((tile_rows, 1), lambda i, si: (i, 0)),  # resident across s sweep
        ],
        out_specs=pl.BlockSpec((tile_rows, tile_s), lambda i, si: (i, si)),
        compiler_params=pltpu.CompilerParams(
            dimension_semantics=("parallel", "parallel"),
            vmem_limit_bytes=_VMEM_LIMIT_BYTES,
        ),
    )(x2d, mask_col)


# ---------------- TFD forward ----------------

@functools.partial(jax.jit, static_argnames=("M", "test_state", "drop_mean_std"))
def _tfd_apply(inputs, key, M, test_state, drop_mean_std):
    if test_state:
        # Eval mode: identity.  Skip even tracing the mean/RNG/scale work.
        return inputs

    bs, chns, D, H, W = inputs.shape
    S = D * H * W
    BC = bs * chns
    x2d = inputs.reshape(BC, S)

    tile_rows, tile_s = _choose_tiles(BC, S, jnp.dtype(inputs.dtype).itemsize)

    # scores = AdaptiveAvgPool3d(1)(inputs) -> (bs, chns), computed in Pallas.
    scores = _spatial_mean(x2d, tile_rows, tile_s)[:, 0].reshape(bs, chns)

    k2, k3, k4 = jax.random.split(key, 3)

    # torch.multinomial(scores, M) without replacement == Gumbel top-k on log-weights.
    # multinomial requires nonnegative weights; clamp so negatives can't yield NaN.
    scores = jnp.maximum(scores, 0.0)
    u = jax.random.uniform(k2, (bs, chns), minval=1e-7, maxval=1.0)
    gumbel = -jnp.log(-jnp.log(u))
    keys_to_choose = jax.lax.top_k(jnp.log(scores + 1e-30) + gumbel, M)[1]
    mask = (jax.nn.one_hot(keys_to_choose, chns, dtype=jnp.float32).sum(axis=1)
            > 0.0).astype(jnp.float32)

    # RNG_drop ~ N(drop_mean, drop_std), clamped at 0; RNG_mask = (U[0,1) > RNG_drop).
    drop_mean, drop_std = drop_mean_std
    rng_drop = jnp.maximum(drop_mean + drop_std * jax.random.normal(k3, ()), 0.0)
    rng_mask = (jax.random.uniform(k4, (bs, chns)) > rng_drop).astype(jnp.float32)
    dropped_mask = (mask * rng_mask).reshape(BC, 1).astype(inputs.dtype)  # exact {0,1}

    out2d = _masked_scale(x2d, dropped_mask, tile_rows, tile_s)
    return out2d.reshape(bs, chns, D, H, W)


def tfd_forward(inputs, key, channels, test_state=False,
                M_ratio_range=(0.85, 0.9), drop_mean_std=(0.2, 0.05),
                np_rng=None):
    """Forward pass matching the PyTorch TFD module."""
    assert M_ratio_range[1] > M_ratio_range[0]
    bs, chns = inputs.shape[0], inputs.shape[1]
    assert chns == channels

    # M_ratio / M use host-side numpy RNG (as the PyTorch code does); M stays a
    # static Python int so there is no device->host sync and top_k has a static k.
    rng = np_rng if np_rng is not None else np.random.default_rng()
    m_ratio = float(M_ratio_range[0]
                    + rng.random() * (M_ratio_range[1] - M_ratio_range[0]))
    M = int(np.ceil(channels * m_ratio))

    return _tfd_apply(inputs, key, M, bool(test_state), tuple(drop_mean_std))


if __name__ == "__main__":
    bs, channels, D, H, W = 2, 8, 4, 8, 16
    key = jax.random.PRNGKey(0)
    k_in, k_fwd = jax.random.split(key)
    # torch.multinomial requires nonnegative weights -> use nonnegative inputs.
    inputs = jax.random.uniform(k_in, (bs, channels, D, H, W), dtype=jnp.float32)

    out = tfd_forward(inputs, k_fwd, channels, test_state=False,
                      np_rng=np.random.default_rng(0))
    out = jax.block_until_ready(out)

    # sanity: shape preserved; every channel is either passed through unchanged
    # (mask == 1) or zeroed out (mask == 0).
    assert out.shape == inputs.shape
    out_f = out.reshape(bs, channels, -1)
    in_f = inputs.reshape(bs, channels, -1)
    kept = (out_f != 0).any(axis=-1)
    ok = jnp.all(jnp.where(kept[..., None], out_f == in_f, out_f == 0))
    assert bool(ok)

    # also exercise eval mode (identity path)
    out_eval = jax.block_until_ready(
        tfd_forward(inputs, k_fwd, channels, test_state=True,
                    np_rng=np.random.default_rng(0)))
    assert bool(jnp.all(out_eval == inputs))
    print("KERNEL_OK")
</pallas_src>

<mosaic_0001>
module attributes {stable_mosaic.version = 11 : i64} {
  func.func @_mean_kernel(%arg0: i32, %arg1: i32, %arg2: memref<8x512xf32, #tpu.memory_space<vmem>>, %arg3: memref<8x1xf32, #tpu.memory_space<vmem>>) attributes {dimension_semantics = [#tpu.dimension_semantics<parallel>, #tpu.dimension_semantics<arbitrary>], iteration_bounds = array<i64: 2, 1>, scalar_prefetch = 0 : i64, scratch_operands = 0 : i64, tpu.core_type = #tpu.core_type<tc>, window_params = [{transform_indices = @transform_0, window_bounds = array<i64: 8, 512>}, {transform_indices = @transform_1, window_bounds = array<i64: 8, 1>}]} {
    %c0_i32 = arith.constant 0 : i32
    %0 = arith.cmpi eq, %arg1, %c0_i32 : i32
    %1 = arith.extui %0 : i1 to i32
    %c0_i32_0 = arith.constant 0 : i32
    %2 = arith.cmpi ne, %1, %c0_i32_0 : i32
    scf.if %2 {
      %cst_8 = arith.constant 0.000000e+00 : f32
      %12 = vector.broadcast %cst_8 : f32 to vector<8x1xf32>
      %c0_9 = arith.constant 0 : index
      %c0_10 = arith.constant 0 : index
      %13 = vector.load %arg3[%c0_9, %c0_10] : memref<8x1xf32, #tpu.memory_space<vmem>>, vector<8x1xf32>
      tpu.vector_store %arg3[%c0_9, %c0_10], %12 {strides = array<i32>} : memref<8x1xf32, #tpu.memory_space<vmem>>, vector<8x1xf32>,
    } else {
    }
    %c0 = arith.constant 0 : index
    %c0_1 = arith.constant 0 : index
    %3 = vector.load %arg2[%c0, %c0_1] : memref<8x512xf32, #tpu.memory_space<vmem>>, vector<8x512xf32>
    %c0_2 = arith.constant 0 : index
    %c0_3 = arith.constant 0 : index
    %4 = vector.load %arg3[%c0_2, %c0_3] : memref<8x1xf32, #tpu.memory_space<vmem>>, vector<8x1xf32>
    %cst = arith.constant dense<0.000000e+00> : vector<8xf32>
    %5 = vector.multi_reduction <add>, %3, %cst [1] : vector<8x512xf32> to vector<8xf32>
    %6 = vector.shape_cast %5 : vector<8xf32> to vector<8x1xf32>
    %7 = arith.addf %4, %6 : vector<8x1xf32>
    %c0_4 = arith.constant 0 : index
    %c0_5 = arith.constant 0 : index
    %8 = vector.load %arg3[%c0_4, %c0_5] : memref<8x1xf32, #tpu.memory_space<vmem>>, vector<8x1xf32>
    tpu.vector_store %arg3[%c0_4, %c0_5], %7 {strides = array<i32>} : memref<8x1xf32, #tpu.memory_space<vmem>>, vector<8x1xf32>,
    %c0_i32_6 = arith.constant 0 : i32
    %9 = arith.cmpi eq, %arg1, %c0_i32_6 : i32
    %10 = arith.extui %9 : i1 to i32
    %c0_i32_7 = arith.constant 0 : i32
    %11 = arith.cmpi ne, %10, %c0_i32_7 : i32
    scf.if %11 {
      %c0_8 = arith.constant 0 : index
      %c0_9 = arith.constant 0 : index
      %12 = vector.load %arg3[%c0_8, %c0_9] : memref<8x1xf32, #tpu.memory_space<vmem>>, vector<8x1xf32>
      %cst_10 = arith.constant 0.001953125 : f32
      %13 = vector.broadcast %cst_10 : f32 to vector<8x1xf32>
      %14 = arith.mulf %12, %13 : vector<8x1xf32>
      %c0_11 = arith.constant 0 : index
      %c0_12 = arith.constant 0 : index
      %15 = vector.load %arg3[%c0_11, %c0_12] : memref<8x1xf32, #tpu.memory_space<vmem>>, vector<8x1xf32>
      tpu.vector_store %arg3[%c0_11, %c0_12], %14 {strides = array<i32>} : memref<8x1xf32, #tpu.memory_space<vmem>>, vector<8x1xf32>,
    } else {
    }
    return
  }
  func.func @transform_0(%arg0: i32, %arg1: i32) -> (i32, i32) {
    %c0_i32 = arith.constant 0 : i32
    return %arg0, %arg1 : i32, i32
  }
  func.func @transform_1(%arg0: i32, %arg1: i32) -> (i32, i32) {
    %c0_i32 = arith.constant 0 : i32
    %c0_i32_0 = arith.constant 0 : i32
    return %arg0, %c0_i32 : i32, i32
  }
}

module attributes {stable_mosaic.version = 11 : i64} {
  func.func @_masked_scale_kernel(%arg0: i32, %arg1: i32, %arg2: memref<8x512xf32, #tpu.memory_space<vmem>>, %arg3: memref<8x1xf32, #tpu.memory_space<vmem>>, %arg4: memref<8x512xf32, #tpu.memory_space<vmem>>) attributes {dimension_semantics = [#tpu.dimension_semantics<parallel>, #tpu.dimension_semantics<parallel>], iteration_bounds = array<i64: 2, 1>, scalar_prefetch = 0 : i64, scratch_operands = 0 : i64, tpu.core_type = #tpu.core_type<tc>, window_params = [{transform_indices = @transform_0, window_bounds = array<i64: 8, 512>}, {transform_indices = @transform_1, window_bounds = array<i64: 8, 1>}, {transform_indices = @transform_2, window_bounds = array<i64: 8, 512>}]} {
    %c0 = arith.constant 0 : index
    %c0_0 = arith.constant 0 : index
    %0 = vector.load %arg2[%c0, %c0_0] : memref<8x512xf32, #tpu.memory_space<vmem>>, vector<8x512xf32>
    %c0_1 = arith.constant 0 : index
    %c0_2 = arith.constant 0 : index
    %1 = vector.load %arg3[%c0_1, %c0_2] : memref<8x1xf32, #tpu.memory_space<vmem>>, vector<8x1xf32>
    %2 = vector.broadcast %1 : vector<8x1xf32> to vector<8x512xf32>
    %3 = arith.mulf %0, %2 : vector<8x512xf32>
    %c0_3 = arith.constant 0 : index
    %c0_4 = arith.constant 0 : index
    %4 = vector.load %arg4[%c0_3, %c0_4] : memref<8x512xf32, #tpu.memory_space<vmem>>, vector<8x512xf32>
    tpu.vector_store %arg4[%c0_3, %c0_4], %3 {strides = array<i32>} : memref<8x512xf32, #tpu.memory_space<vmem>>, vector<8x512xf32>,
    return
  }
  func.func @transform_0(%arg0: i32, %arg1: i32) -> (i32, i32) {
    %c0_i32 = arith.constant 0 : i32
    return %arg0, %arg1 : i32, i32
  }
  func.func @transform_1(%arg0: i32, %arg1: i32) -> (i32, i32) {
    %c0_i32 = arith.constant 0 : i32
    %c0_i32_0 = arith.constant 0 : i32
    return %arg0, %c0_i32 : i32, i32
  }
  func.func @transform_2(%arg0: i32, %arg1: i32) -> (i32, i32) {
    %c0_i32 = arith.constant 0 : i32
    return %arg0, %arg1 : i32, i32
  }
}

</mosaic_0001>

<llo_original>
// kernel: _tfd_apply.4
$region0: #{_tfd_apply.4}
  #allocation0 [shape = 'u32[]', space=smem, size = 0x4, offset = 0x4, fixed_abs, tag = 'smem constant byte address 0x4 - core index']
  #allocation1 [shape = 'u32[72,128]{1,0:T(1,128)}', space=vmem, size = 0x9000, scoped, tag = 'internal scratch']
  %s0 = inlined_call_operand.vmem [shape: f32[16,512], index: 0, kind: input, shape index: {}]
  %s1 = inlined_call_operand.vmem [shape: f32[16,1], index: 1, kind: output, shape index: {}]
  %s2 = sld [smem:[#allocation0]]
  $region45: #{_tfd_apply.4} parent=0
    _
  %s4 = ssub.s32 1, %s2
  %s5 = scalar_select 0, %s4, %s2
  loop: start=0, step=1, limit=4
  $region2: #{_tfd_apply.4} parent=0 // loop_pre_header
    _
  $region3: #{_tfd_apply.4} parent=0 // loop_header
    %s7 = sphi 0, %s11
    %p8 = scmp.ge.s32.totalorder %s7, 4
    %s14 = sphi 0, %s26
    %s15 = sphi 0, %s22
    %s16 = sphi 0, %s14
    %s17 = sphi 0, %s15
    %s18 = sphi 0, %s16
    %s19 = sphi 0, %s17
    %s31 = sphi 0, %s33
    %s34 = sphi 0, %s31
    %s35 = sphi 0, %s34
    %s51 = sphi 0, %s35
    %s57 = sphi 0, %s59
    %s60 = sphi 0, %s57
    %s61 = sphi 0, %s60
    %s77 = sphi 0, %s61
  $region4: #{_tfd_apply.4} parent=0 // loop_header_branch
    %10 = sbr.rel (%p8) target = $region8
  $region5: #{_tfd_apply.4} parent=0 // loop_body
    %s12 = ssub.s32 %s7, 1
    %s13 = ssub.s32 %s7, 2
    %s20 = sadd.s32 1, %s15
    %p21 = scmp.ge.s32.totalorder %s20, 1
    %s22 = scalar_select %p21, 0, %s20
    %s23 = sadd.s32 1, %s14
    %s24 = scalar_select %p21, %s23, %s14
    %p25 = scmp.ge.s32.totalorder %s24, 2
    %s26 = scalar_select %p25, 0, %s24
    %s27 = ssub.s32 %s14, %s26
    %s28 = ssub.s32 %s15, %s22
    %s29 = sor.u32 %s27, %s28
    %p30 = scmp.eq.s32.totalorder %s29, 0
    %s32 = sadd.s32 %s31, 1
    %s33 = scalar_select %p30, %s31, %s32
    %p36 = pneg %p30
    %p37 = scmp.eq.s32.totalorder %s7, 1
    %p38 = por %p36, %p37
    %p39 = scmp.ne.s32.totalorder %s31, %s34
    %p40 = scmp.eq.s32.totalorder %s7, 0
    %p41 = por %p39, %p40
    %p42 = scmp.ne.s32.totalorder %s31, %s34
    %p43 = scmp.eq.s32.totalorder %s12, 1
    %p44 = por %p42, %p43
    %p45 = scmp.ne.s32.totalorder %s34, %s35
    %p46 = scmp.eq.s32.totalorder %s12, 0
    %p47 = por %p45, %p46
    %p48 = scmp.ne.s32.totalorder %s34, %s35
    %p49 = scmp.eq.s32.totalorder %s13, 1
    %p50 = por %p48, %p49
    %p52 = scmp.ne.s32.totalorder %s35, %s51
    %p53 = scmp.eq.s32.totalorder %s13, 0
    %p54 = por %p52, %p53
    %s55 = ssub.s32 %s14, %s26
    %p56 = scmp.eq.s32.totalorder %s55, 0
    %s58 = sadd.s32 %s57, 1
    %s59 = scalar_select %p56, %s57, %s58
    %p62 = pneg %p56
    %p63 = scmp.eq.s32.totalorder %s7, 1
    %p64 = por %p62, %p63
    %p65 = scmp.ne.s32.totalorder %s57, %s60
    %p66 = scmp.eq.s32.totalorder %s7, 0
    %p67 = por %p65, %p66
    %p68 = scmp.ne.s32.totalorder %s57, %s60
    %p69 = scmp.eq.s32.totalorder %s12, 1
    %p70 = por %p68, %p69
    %p71 = scmp.ne.s32.totalorder %s60, %s61
    %p72 = scmp.eq.s32.totalorder %s12, 0
    %p73 = por %p71, %p72
    %p74 = scmp.ne.s32.totalorder %s60, %s61
    %p75 = scmp.eq.s32.totalorder %s13, 1
    %p76 = por %p74, %p75
    %p78 = scmp.ne.s32.totalorder %s61, %s77
    %p79 = scmp.eq.s32.totalorder %s13, 0
    %p80 = por %p78, %p79
    %p81 = scmp.le.s32.totalorder 1, %s7
    %p82 = scmp.lt.s32.totalorder %s7, 3
    %p83 = pnand %p81, %p82
    %p84 = pneg %p83
    // Predicated region
    $region9: #{_tfd_apply.4} parent=5 // pred_check
      _
    $region10: #{_tfd_apply.4} parent=5 // pred_check_branch
      %86 = sbr.rel (%p83) target = $region12
    $region11: #{_tfd_apply.4} parent=5 // pred_region
      %s87 = ssub.s32 %s7, 1
    $region12: #{_tfd_apply.4} parent=5 // pred_fallthru
      _
    %p88 = scmp.lt.s32.totalorder %s7, 2
    // Predicated region
    $region13: #{_tfd_apply.4} parent=5 // pred_check
      %p89 = pneg %p88
    $region14: #{_tfd_apply.4} parent=5 // pred_check_branch
      %91 = sbr.rel (%p89) target = $region16
    $region15: #{_tfd_apply.4} parent=5 // pred_region
      // Predicated region
      $region17: #{_tfd_apply.4} parent=15 // pred_check
        %p92 = pneg %p41
      $region18: #{_tfd_apply.4} parent=15 // pred_check_branch
        %94 = sbr.rel (%p92) target = $region20
      $region19: #{_tfd_apply.4} parent=15 // pred_region
        %s95 = smul.u32 4, %s15
        %p96 = scmp.lt.s32.totalorder %s14, 1
        %s97 = scalar_select %p96, %s14, 1
        %p98 = scmp.lt.s32.totalorder %s95, 3
        %s99 = scalar_select %p98, %s95, 3
        %s100 = smul.addr %s97, 4
        %s101 = sadd.s32 %s99, %s100
        %s102 = smul.addr %s101, 8
        %s103 = scalar_lea.vmem %s0, %s102
        %s104 = smul.u32 4, %s15
      $region20: #{_tfd_apply.4} parent=15 // pred_fallthru
        _
    $region16: #{_tfd_apply.4} parent=5 // pred_fallthru
      _
    %p105 = scmp.le.s32.totalorder 1, %s7
    %p106 = scmp.lt.s32.totalorder %s7, 3
    %p107 = pnand %p105, %p106
    %p108 = pneg %p107
    // Predicated region
    $region21: #{_tfd_apply.4} parent=5 // pred_check
      _
    $region22: #{_tfd_apply.4} parent=5 // pred_check_branch
      %110 = sbr.rel (%p107) target = $region24
    $region23: #{_tfd_apply.4} parent=5 // pred_region
      %s111 = ssub.s32 %s7, 1
      %s112 = smul.u32 4, %s17
      %p113 = scmp.lt.s32.totalorder %s16, 1
      %s114 = scalar_select %p113, %s16, 1
      %p115 = scmp.lt.s32.totalorder %s112, 3
      %s116 = scalar_select %p115, %s112, 3
      %s117 = smul.addr %s114, 4
      %s118 = sadd.s32 %s116, %s117
      %s119 = smul.addr %s118, 8
      %s120 = scalar_lea.vmem %s0, %s119
      %p121 = pneg %p47
      %p122 = pneg %p44
      %p123 = pneg %p73
      %p124 = pneg %p70
      %p125 = scmp.lt.s32.totalorder %s16, 1
      %s126 = scalar_select %p125, %s16, 1
      %s127 = smul.addr %s126, 8
      %s128 = scalar_lea.vmem %s1, %s127
      %s129 = smul.u32 4, %s17
      %p130 = scmp.lt.s32.totalorder %s16, 1
      %s131 = scalar_select %p130, %s16, 1
      %p132 = scmp.lt.s32.totalorder %s129, 3
      %s133 = scalar_select %p132, %s129, 3
      %s134 = smul.addr %s131, 4
      %s135 = sadd.s32 %s133, %s134
      %s136 = smul.addr %s135, 8
      %s137 = scalar_lea.vmem %s0, %s136
      %s138 = smul.u32 4, %s17
      %p139 = scmp.lt.s32.totalorder %s16, 1
      %s140 = scalar_select %p139, %s16, 1
      %s141 = smul.addr %s140, 8
      %s142 = scalar_lea.vmem %s1, %s141
      %p143 = scmp.eq.s32.totalorder %s17, 0
      // Predicated region
      $region25: #{_tfd_apply.4} parent=23 // pred_check
        %p144 = pneg %p143
      $region26: #{_tfd_apply.4} parent=23 // pred_check_branch
        %146 = sbr.rel (%p144) target = $region28
      $region27: #{_tfd_apply.4} parent=23 // pred_region
        %vm147 = vcmask 7168
        %148 = vst.msk [vmem:[%s142] sm:$0xff] %vm147, 0.0
      $region28: #{_tfd_apply.4} parent=23 // pred_fallthru
        _
      %v149 = vld [vmem:[%s137] sm:$0xff]
      %v150 = vld [vmem:[%s137 + $0x8] sm:$0xff]
      %v151 = vld [vmem:[%s137 + $0x10] sm:$0xff]
      %v152 = vld [vmem:[%s137 + $0x18] sm:$0xff]
      %v153 = vld [vmem:[%s142] sm:$0xff]
      %v154 = vadd.f32 %v149, %v150
      %v155 = vadd.f32 %v154, %v151
      %v156 = vadd.f32 %v155, %v152
      %157 = vadd.xlane.f32.xlu0 %v156
      %v158 = vpop.xlane.xlu0 %157
      %v159 = vadd.f32 %v153, %v158
      %vm160 = vcmask 7168
      %161 = vst.msk [vmem:[%s142] sm:$0xff] %vm160, %v159
      // Predicated region
      $region29: #{_tfd_apply.4} parent=23 // pred_check
        %p162 = pneg %p143
      $region30: #{_tfd_apply.4} parent=23 // pred_check_branch
        %164 = sbr.rel (%p162) target = $region32
      $region31: #{_tfd_apply.4} parent=23 // pred_region
        %v165 = vld [vmem:[%s142] sm:$0xff]
        %v166 = vmul.f32 %v165, 0.001953125
        %167 = vst.msk [vmem:[%s142] sm:$0xff] %vm160, %v166
      $region32: #{_tfd_apply.4} parent=23 // pred_fallthru
        _
      %p168 = scmp.lt.s32.totalorder %s16, 1
      %s169 = scalar_select %p168, %s16, 1
      %s170 = smul.addr %s169, 8
      %s171 = scalar_lea.vmem %s1, %s170
      // Predicated region
      $region33: #{_tfd_apply.4} parent=23 // pred_check
        %p172 = pneg %p70
      $region34: #{_tfd_apply.4} parent=23 // pred_check_branch
        %174 = sbr.rel (%p172) target = $region36
      $region35: #{_tfd_apply.4} parent=23 // pred_region
        _
      $region36: #{_tfd_apply.4} parent=23 // pred_fallthru
        _
    $region24: #{_tfd_apply.4} parent=5 // pred_fallthru
      _
    %p175 = scmp.le.s32.totalorder 2, %s7
    // Predicated region
    $region37: #{_tfd_apply.4} parent=5 // pred_check
      %p176 = pneg %p175
    $region38: #{_tfd_apply.4} parent=5 // pred_check_branch
      %178 = sbr.rel (%p176) target = $region40
    $region39: #{_tfd_apply.4} parent=5 // pred_region
      %s179 = ssub.s32 %s7, 2
      // Predicated region
      $region41: #{_tfd_apply.4} parent=39 // pred_check
        %p180 = pneg %p76
      $region42: #{_tfd_apply.4} parent=39 // pred_check_branch
        %182 = sbr.rel (%p180) target = $region44
      $region43: #{_tfd_apply.4} parent=39 // pred_region
        %p183 = scmp.lt.s32.totalorder %s18, 1
        %s184 = scalar_select %p183, %s18, 1
        %s185 = smul.addr %s184, 8
        %s186 = scalar_lea.vmem %s1, %s185
      $region44: #{_tfd_apply.4} parent=39 // pred_fallthru
        _
    $region40: #{_tfd_apply.4} parent=5 // pred_fallthru
      _
  $region6: #{_tfd_apply.4} parent=0 // loop_footer
    %s11 = sadd.s32 1, %s7
  $region7: #{_tfd_apply.4} parent=0 // loop_footer_branch
    %6 = sbr.rel target = $region3
  $region8: #{_tfd_apply.4} parent=0 // loop_exit
    _

// kernel: _tfd_apply.5
$region0: #{_tfd_apply.5}
  #allocation0 [shape = 'u32[]', space=smem, size = 0x4, offset = 0x4, fixed_abs, tag = 'smem constant byte address 0x4 - core index']
  #allocation1 [shape = 'u32[72,128]{1,0:T(1,128)}', space=vmem, size = 0x9000, scoped, tag = 'internal scratch']
  %s0 = inlined_call_operand.vmem [shape: f32[16,512], index: 0, kind: input, shape index: {}]
  %s1 = inlined_call_operand.vmem [shape: f32[16,1], index: 1, kind: input, shape index: {}]
  %s2 = inlined_call_operand.vmem [shape: f32[16,512], index: 2, kind: output, shape index: {}]
  %s3 = sld [smem:[#allocation0]]
  $region41: #{_tfd_apply.5} parent=0
    _
  %s5 = ssub.s32 1, %s3
  %s6 = scalar_select 0, %s5, %s3
  loop: start=0, step=1, limit=4
  $region2: #{_tfd_apply.5} parent=0 // loop_pre_header
    _
  $region3: #{_tfd_apply.5} parent=0 // loop_header
    %s8 = sphi 0, %s12
    %p9 = scmp.ge.s32.totalorder %s8, 4
    %s15 = sphi 0, %s27
    %s16 = sphi 0, %s23
    %s17 = sphi 0, %s15
    %s18 = sphi 0, %s16
    %s19 = sphi 0, %s17
    %s20 = sphi 0, %s18
    %s32 = sphi 0, %s34
    %s35 = sphi 0, %s32
    %s36 = sphi 0, %s35
    %s52 = sphi 0, %s36
    %s58 = sphi 0, %s60
    %s61 = sphi 0, %s58
    %s62 = sphi 0, %s61
    %s78 = sphi 0, %s62
    %s86 = sphi 0, %s88
    %s89 = sphi 0, %s86
    %s90 = sphi 0, %s89
    %s106 = sphi 0, %s90
  $region4: #{_tfd_apply.5} parent=0 // loop_header_branch
    %11 = sbr.rel (%p9) target = $region8
  $region5: #{_tfd_apply.5} parent=0 // loop_body
    %s13 = ssub.s32 %s8, 1
    %s14 = ssub.s32 %s8, 2
    %s21 = sadd.s32 1, %s16
    %p22 = scmp.ge.s32.totalorder %s21, 1
    %s23 = scalar_select %p22, 0, %s21
    %s24 = sadd.s32 1, %s15
    %s25 = scalar_select %p22, %s24, %s15
    %p26 = scmp.ge.s32.totalorder %s25, 2
    %s27 = scalar_select %p26, 0, %s25
    %s28 = ssub.s32 %s15, %s27
    %s29 = ssub.s32 %s16, %s23
    %s30 = sor.u32 %s28, %s29
    %p31 = scmp.eq.s32.totalorder %s30, 0
    %s33 = sadd.s32 %s32, 1
    %s34 = scalar_select %p31, %s32, %s33
    %p37 = pneg %p31
    %p38 = scmp.eq.s32.totalorder %s8, 1
    %p39 = por %p37, %p38
    %p40 = scmp.ne.s32.totalorder %s32, %s35
    %p41 = scmp.eq.s32.totalorder %s8, 0
    %p42 = por %p40, %p41
    %p43 = scmp.ne.s32.totalorder %s32, %s35
    %p44 = scmp.eq.s32.totalorder %s13, 1
    %p45 = por %p43, %p44
    %p46 = scmp.ne.s32.totalorder %s35, %s36
    %p47 = scmp.eq.s32.totalorder %s13, 0
    %p48 = por %p46, %p47
    %p49 = scmp.ne.s32.totalorder %s35, %s36
    %p50 = scmp.eq.s32.totalorder %s14, 1
    %p51 = por %p49, %p50
    %p53 = scmp.ne.s32.totalorder %s36, %s52
    %p54 = scmp.eq.s32.totalorder %s14, 0
    %p55 = por %p53, %p54
    %s56 = ssub.s32 %s15, %s27
    %p57 = scmp.eq.s32.totalorder %s56, 0
    %s59 = sadd.s32 %s58, 1
    %s60 = scalar_select %p57, %s58, %s59
    %p63 = pneg %p57
    %p64 = scmp.eq.s32.totalorder %s8, 1
    %p65 = por %p63, %p64
    %p66 = scmp.ne.s32.totalorder %s58, %s61
    %p67 = scmp.eq.s32.totalorder %s8, 0
    %p68 = por %p66, %p67
    %p69 = scmp.ne.s32.totalorder %s58, %s61
    %p70 = scmp.eq.s32.totalorder %s13, 1
    %p71 = por %p69, %p70
    %p72 = scmp.ne.s32.totalorder %s61, %s62
    %p73 = scmp.eq.s32.totalorder %s13, 0
    %p74 = por %p72, %p73
    %p75 = scmp.ne.s32.totalorder %s61, %s62
    %p76 = scmp.eq.s32.totalorder %s14, 1
    %p77 = por %p75, %p76
    %p79 = scmp.ne.s32.totalorder %s62, %s78
    %p80 = scmp.eq.s32.totalorder %s14, 0
    %p81 = por %p79, %p80
    %s82 = ssub.s32 %s15, %s27
    %s83 = ssub.s32 %s16, %s23
    %s84 = sor.u32 %s82, %s83
    %p85 = scmp.eq.s32.totalorder %s84, 0
    %s87 = sadd.s32 %s86, 1
    %s88 = scalar_select %p85, %s86, %s87
    %p91 = pneg %p85
    %p92 = scmp.eq.s32.totalorder %s8, 1
    %p93 = por %p91, %p92
    %p94 = scmp.ne.s32.totalorder %s86, %s89
    %p95 = scmp.eq.s32.totalorder %s8, 0
    %p96 = por %p94, %p95
    %p97 = scmp.ne.s32.totalorder %s86, %s89
    %p98 = scmp.eq.s32.totalorder %s13, 1
    %p99 = por %p97, %p98
    %p100 = scmp.ne.s32.totalorder %s89, %s90
    %p101 = scmp.eq.s32.totalorder %s13, 0
    %p102 = por %p100, %p101
    %p103 = scmp.ne.s32.totalorder %s89, %s90
    %p104 = scmp.eq.s32.totalorder %s14, 1
    %p105 = por %p103, %p104
    %p107 = scmp.ne.s32.totalorder %s90, %s106
    %p108 = scmp.eq.s32.totalorder %s14, 0
    %p109 = por %p107, %p108
    %p110 = scmp.le.s32.totalorder 1, %s8
    %p111 = scmp.lt.s32.totalorder %s8, 3
    %p112 = pnand %p110, %p111
    %p113 = pneg %p112
    // Predicated region
    $region9: #{_tfd_apply.5} parent=5 // pred_check
      _
    $region10: #{_tfd_apply.5} parent=5 // pred_check_branch
      %115 = sbr.rel (%p112) target = $region12
    $region11: #{_tfd_apply.5} parent=5 // pred_region
      %s116 = ssub.s32 %s8, 1
    $region12: #{_tfd_apply.5} parent=5 // pred_fallthru
      _
    %p117 = scmp.lt.s32.totalorder %s8, 2
    // Predicated region
    $region13: #{_tfd_apply.5} parent=5 // pred_check
      %p118 = pneg %p117
    $region14: #{_tfd_apply.5} parent=5 // pred_check_branch
      %120 = sbr.rel (%p118) target = $region16
    $region15: #{_tfd_apply.5} parent=5 // pred_region
      // Predicated region
      $region17: #{_tfd_apply.5} parent=15 // pred_check
        %p121 = pneg %p42
      $region18: #{_tfd_apply.5} parent=15 // pred_check_branch
        %123 = sbr.rel (%p121) target = $region20
      $region19: #{_tfd_apply.5} parent=15 // pred_region
        %s124 = smul.u32 4, %s16
        %p125 = scmp.lt.s32.totalorder %s15, 1
        %s126 = scalar_select %p125, %s15, 1
        %p127 = scmp.lt.s32.totalorder %s124, 3
        %s128 = scalar_select %p127, %s124, 3
        %s129 = smul.addr %s126, 4
        %s130 = sadd.s32 %s128, %s129
        %s131 = smul.addr %s130, 8
        %s132 = scalar_lea.vmem %s0, %s131
        %s133 = smul.u32 4, %s16
      $region20: #{_tfd_apply.5} parent=15 // pred_fallthru
        _
      // Predicated region
      $region21: #{_tfd_apply.5} parent=15 // pred_check
        %p134 = pneg %p68
      $region22: #{_tfd_apply.5} parent=15 // pred_check_branch
        %136 = sbr.rel (%p134) target = $region24
      $region23: #{_tfd_apply.5} parent=15 // pred_region
        %p137 = scmp.lt.s32.totalorder %s15, 1
        %s138 = scalar_select %p137, %s15, 1
        %s139 = smul.addr %s138, 8
        %s140 = scalar_lea.vmem %s1, %s139
      $region24: #{_tfd_apply.5} parent=15 // pred_fallthru
        _
    $region16: #{_tfd_apply.5} parent=5 // pred_fallthru
      _
    %p141 = scmp.le.s32.totalorder 1, %s8
    %p142 = scmp.lt.s32.totalorder %s8, 3
    %p143 = pnand %p141, %p142
    %p144 = pneg %p143
    // Predicated region
    $region25: #{_tfd_apply.5} parent=5 // pred_check
      _
    $region26: #{_tfd_apply.5} parent=5 // pred_check_branch
      %146 = sbr.rel (%p143) target = $region28
    $region27: #{_tfd_apply.5} parent=5 // pred_region
      %s147 = ssub.s32 %s8, 1
      %s148 = smul.u32 4, %s18
      %p149 = scmp.lt.s32.totalorder %s17, 1
      %s150 = scalar_select %p149, %s17, 1
      %p151 = scmp.lt.s32.totalorder %s148, 3
      %s152 = scalar_select %p151, %s148, 3
      %s153 = smul.addr %s150, 4
      %s154 = sadd.s32 %s152, %s153
      %s155 = smul.addr %s154, 8
      %s156 = scalar_lea.vmem %s0, %s155
      %p157 = pneg %p48
      %p158 = pneg %p45
      %p159 = scmp.lt.s32.totalorder %s17, 1
      %s160 = scalar_select %p159, %s17, 1
      %s161 = smul.addr %s160, 8
      %s162 = scalar_lea.vmem %s1, %s161
      %p163 = pneg %p74
      %p164 = pneg %p71
      %p165 = pneg %p102
      %p166 = pneg %p99
      %s167 = smul.u32 4, %s18
      %p168 = scmp.lt.s32.totalorder %s17, 1
      %s169 = scalar_select %p168, %s17, 1
      %p170 = scmp.lt.s32.totalorder %s167, 3
      %s171 = scalar_select %p170, %s167, 3
      %s172 = smul.addr %s169, 4
      %s173 = sadd.s32 %s171, %s172
      %s174 = smul.addr %s173, 8
      %s175 = scalar_lea.vmem %s2, %s174
      %s176 = smul.u32 4, %s18
      %p177 = scmp.lt.s32.totalorder %s17, 1
      %s178 = scalar_select %p177, %s17, 1
      %p179 = scmp.lt.s32.totalorder %s176, 3
      %s180 = scalar_select %p179, %s176, 3
      %s181 = smul.addr %s178, 4
      %s182 = sadd.s32 %s180, %s181
      %s183 = smul.addr %s182, 8
      %s184 = scalar_lea.vmem %s0, %s183
      %s185 = smul.u32 4, %s18
      %p186 = scmp.lt.s32.totalorder %s17, 1
      %s187 = scalar_select %p186, %s17, 1
      %s188 = smul.addr %s187, 8
      %s189 = scalar_lea.vmem %s1, %s188
      %s190 = smul.u32 4, %s18
      %p191 = scmp.lt.s32.totalorder %s17, 1
      %s192 = scalar_select %p191, %s17, 1
      %p193 = scmp.lt.s32.totalorder %s190, 3
      %s194 = scalar_select %p193, %s190, 3
      %s195 = smul.addr %s192, 4
      %s196 = sadd.s32 %s194, %s195
      %s197 = smul.addr %s196, 8
      %s198 = scalar_lea.vmem %s2, %s197
      %s199 = smul.u32 4, %s18
      %v200 = vld [vmem:[%s184] sm:$0xff]
      %v201 = vld [vmem:[%s184 + $0x8] sm:$0xff]
      %v202 = vld [vmem:[%s184 + $0x10] sm:$0xff]
      %v203 = vld [vmem:[%s184 + $0x18] sm:$0xff]
      %v204 = vld [vmem:[%s189] sm:$0xff]
      %206 = vset.pattern.permute.xlu0 0
      %207 = vperm.xlu0 %206, %v204
      %v208 = vpop.permute.xlu0 %207
      %v210 = vmul.f32 %v200, %v208
      %v211 = vmul.f32 %v201, %v208
      %v212 = vmul.f32 %v202, %v208
      %v213 = vmul.f32 %v203, %v208
      %214 = vst [vmem:[%s198] sm:$0xff] %v210
      %215 = vst [vmem:[%s198 + $0x8] sm:$0xff] %v211
      %216 = vst [vmem:[%s198 + $0x10] sm:$0xff] %v212
      %217 = vst [vmem:[%s198 + $0x18] sm:$0xff] %v213
      %s218 = smul.u32 4, %s18
      %p219 = scmp.lt.s32.totalorder %s17, 1
      %s220 = scalar_select %p219, %s17, 1
      %p221 = scmp.lt.s32.totalorder %s218, 3
      %s222 = scalar_select %p221, %s218, 3
      %s223 = smul.addr %s220, 4
      %s224 = sadd.s32 %s222, %s223
      %s225 = smul.addr %s224, 8
      %s226 = scalar_lea.vmem %s2, %s225
      // Predicated region
      $region29: #{_tfd_apply.5} parent=27 // pred_check
        %p227 = pneg %p99
      $region30: #{_tfd_apply.5} parent=27 // pred_check_branch
        %229 = sbr.rel (%p227) target = $region32
      $region31: #{_tfd_apply.5} parent=27 // pred_region
        %s230 = smul.u32 4, %s18
      $region32: #{_tfd_apply.5} parent=27 // pred_fallthru
        _
    $region28: #{_tfd_apply.5} parent=5 // pred_fallthru
      _
    %p231 = scmp.le.s32.totalorder 2, %s8
    // Predicated region
    $region33: #{_tfd_apply.5} parent=5 // pred_check
      %p232 = pneg %p231
    $region34: #{_tfd_apply.5} parent=5 // pred_check_branch
      %234 = sbr.rel (%p232) target = $region36
    $region35: #{_tfd_apply.5} parent=5 // pred_region
      %s235 = ssub.s32 %s8, 2
      // Predicated region
      $region37: #{_tfd_apply.5} parent=35 // pred_check
        %p236 = pneg %p105
      $region38: #{_tfd_apply.5} parent=35 // pred_check_branch
        %238 = sbr.rel (%p236) target = $region40
      $region39: #{_tfd_apply.5} parent=35 // pred_region
        %s239 = smul.u32 4, %s20
        %p240 = scmp.lt.s32.totalorder %s19, 1
        %s241 = scalar_select %p240, %s19, 1
        %p242 = scmp.lt.s32.totalorder %s239, 3
        %s243 = scalar_select %p242, %s239, 3
        %s244 = smul.addr %s241, 4
        %s245 = sadd.s32 %s243, %s244
        %s246 = smul.addr %s245, 8
        %s247 = scalar_lea.vmem %s2, %s246
      $region40: #{_tfd_apply.5} parent=35 // pred_fallthru
        _
    $region36: #{_tfd_apply.5} parent=5 // pred_fallthru
      _
  $region6: #{_tfd_apply.5} parent=0 // loop_footer
    %s12 = sadd.s32 1, %s8
  $region7: #{_tfd_apply.5} parent=0 // loop_footer_branch
    %7 = sbr.rel target = $region3
  $region8: #{_tfd_apply.5} parent=0 // loop_exit
    _

</llo_original>
